<compile_context>
chip_gen: v5e
topology: v5e:2x2
jax: 0.10.0
libtpu: 0.0.40
codegen_flags: <defaults>
</compile_context>

<pallas_src>
import functools

import jax
import jax.numpy as jnp
from jax.experimental import pallas as pl
from jax.experimental.pallas import tpu as pltpu

_TARGET_BLOCK_ELEMS = 256 * 1024  # ~1 MiB per f32 block (safe on v7x's 64 MiB VMEM)


def _gaussian_noise_kernel(x_ref, noise_ref, o_ref, *, sigma):
    x = x_ref[...]
    # out = x + N(0,1) * (sigma * x); computed in the input dtype (bf16 stays bf16).
    o_ref[...] = x + noise_ref[...] * (sigma * x)


def _choose_layout(n):
    """Pick a lane-dense 2-D slab (rows, lanes) for a flat length n."""
    # Prefer the widest 128-multiple lane width that divides n exactly
    # (no padding copy needed); otherwise fall back to 512 lanes + pad.
    for lanes in (4096, 2048, 1024, 512, 256, 128):
        if n % lanes == 0:
            return lanes, n // lanes, 0
    lanes = 512
    rows = -(-n // lanes)
    return lanes, rows, rows * lanes - n


def gaussian_noise(x, seed, *, sigma=0.1, training=True):
    """Pallas TPU implementation of GaussianNoise.forward."""
    if (not training) or sigma == 0:
        return x

    orig_shape = x.shape
    dtype = x.dtype

    # Standard-normal noise with the same shape as x (portable, deterministic
    # per seed, independent of the kernel tiling).
    key = jax.random.PRNGKey(seed)
    noise = jax.random.normal(key, orig_shape, dtype)

    n = int(x.size)
    lanes, rows, pad = _choose_layout(n)

    x_flat = x.reshape(-1)
    noise_flat = noise.reshape(-1)
    if pad:
        x_flat = jnp.pad(x_flat, (0, pad))
        noise_flat = jnp.pad(noise_flat, (0, pad))
    x2d = x_flat.reshape(rows, lanes)
    n2d = noise_flat.reshape(rows, lanes)

    # Block rows: ~1 MiB f32 per block; multiple of 8 or the full row extent.
    # (With 3 slabs x 2 pipeline buffers this stays well under the scoped
    # VMEM limit on every generation, including v7x's 64 MiB.)
    br = max(1, _TARGET_BLOCK_ELEMS // lanes)
    if rows <= br:
        br = rows
    else:
        br = max(8, (br // 8) * 8)
    grid = (pl.cdiv(rows, br),)

    kernel = functools.partial(_gaussian_noise_kernel, sigma=float(sigma))
    spec = pl.BlockSpec((br, lanes), lambda i: (i, 0))

    # TODO(synk): could add input_output_aliases={0: 0} if callers never need x
    # after the call; kept non-aliased here since the test reuses x.
    out2d = pl.pallas_call(
        kernel,
        out_shape=jax.ShapeDtypeStruct((rows, lanes), dtype),
        grid=grid,
        in_specs=[spec, spec],
        out_specs=spec,
        compiler_params=pltpu.CompilerParams(
            dimension_semantics=("parallel",),   # elementwise: shard across TCs
            vmem_limit_bytes=32 * 1024 * 1024,   # headroom for 3 slabs x 2 buffers
        ),
    )(x2d, n2d)

    out_flat = out2d.reshape(-1)
    if pad:
        out_flat = out_flat[:n]
    return out_flat.reshape(orig_shape)


if __name__ == "__main__":
    key = jax.random.PRNGKey(0)
    # NCHW input consistent with a conv-style feature map.
    x = jax.random.normal(key, (2, 4, 16, 16), dtype=jnp.float32)

    sigma = 0.1
    seed = 1234

    # Training mode: relative Gaussian noise is added.
    y_train = jax.block_until_ready(gaussian_noise(x, seed, sigma=sigma, training=True))
    assert y_train.shape == x.shape and y_train.dtype == x.dtype

    # Reference with the identical noise draw, fused in plain JAX.
    ref_noise = jax.random.normal(jax.random.PRNGKey(seed), x.shape, x.dtype)
    ref = x + ref_noise * (sigma * x)
    assert bool(jnp.allclose(y_train, ref, atol=1e-5, rtol=1e-5))

    # Sanity: perturbation is relative (scaled by sigma*|x|).
    rel = jnp.abs(y_train - x) / (jnp.abs(x) + 1e-8)
    assert float(jnp.mean(rel)) < 1.0

    # Eval mode (and sigma == 0): identity.
    y_eval = jax.block_until_ready(gaussian_noise(x, seed, sigma=sigma, training=False))
    assert bool(jnp.all(y_eval == x))

    print("KERNEL_OK")
</pallas_src>

<mosaic_0001>
module attributes {stable_mosaic.version = 11 : i64} {
  func.func @_gaussian_noise_kernel(%arg0: i32, %arg1: memref<1x2048xf32, #tpu.memory_space<vmem>>, %arg2: memref<1x2048xf32, #tpu.memory_space<vmem>>, %arg3: memref<1x2048xf32, #tpu.memory_space<vmem>>) attributes {dimension_semantics = [#tpu.dimension_semantics<parallel>], iteration_bounds = array<i64: 1>, scalar_prefetch = 0 : i64, scratch_operands = 0 : i64, tpu.core_type = #tpu.core_type<tc>, window_params = [{transform_indices = @transform_0, window_bounds = array<i64: 1, 2048>}, {transform_indices = @transform_1, window_bounds = array<i64: 1, 2048>}, {transform_indices = @transform_2, window_bounds = array<i64: 1, 2048>}]} {
    %c0 = arith.constant 0 : index
    %c0_0 = arith.constant 0 : index
    %0 = vector.load %arg1[%c0, %c0_0] : memref<1x2048xf32, #tpu.memory_space<vmem>>, vector<1x2048xf32>
    %c0_1 = arith.constant 0 : index
    %c0_2 = arith.constant 0 : index
    %1 = vector.load %arg2[%c0_1, %c0_2] : memref<1x2048xf32, #tpu.memory_space<vmem>>, vector<1x2048xf32>
    %cst = arith.constant 1.000000e-01 : f32
    %2 = vector.broadcast %cst : f32 to vector<1x2048xf32>
    %3 = arith.mulf %2, %0 : vector<1x2048xf32>
    %4 = arith.mulf %1, %3 : vector<1x2048xf32>
    %5 = arith.addf %0, %4 : vector<1x2048xf32>
    %c0_3 = arith.constant 0 : index
    %c0_4 = arith.constant 0 : index
    %6 = vector.load %arg3[%c0_3, %c0_4] : memref<1x2048xf32, #tpu.memory_space<vmem>>, vector<1x2048xf32>
    tpu.vector_store %arg3[%c0_3, %c0_4], %5 {strides = array<i32>} : memref<1x2048xf32, #tpu.memory_space<vmem>>, vector<1x2048xf32>,
    return
  }
  func.func @transform_0(%arg0: i32) -> (i32, i32) {
    %c0_i32 = arith.constant 0 : i32
    %c0_i32_0 = arith.constant 0 : i32
    return %arg0, %c0_i32 : i32, i32
  }
  func.func @transform_1(%arg0: i32) -> (i32, i32) {
    %c0_i32 = arith.constant 0 : i32
    %c0_i32_0 = arith.constant 0 : i32
    return %arg0, %c0_i32 : i32, i32
  }
  func.func @transform_2(%arg0: i32) -> (i32, i32) {
    %c0_i32 = arith.constant 0 : i32
    %c0_i32_0 = arith.constant 0 : i32
    return %arg0, %c0_i32 : i32, i32
  }
}

</mosaic_0001>

<llo_original>
// kernel: tpu_custom_call.1
$region0: #{tpu_custom_call.1}
  #allocation0 [shape = 'u32[]', space=smem, size = 0x4, offset = 0x4, fixed_abs, tag = 'smem constant byte address 0x4 - core index']
  #allocation1 [shape = 'u32[72,128]{1,0:T(1,128)}', space=vmem, size = 0x9000, scoped, tag = 'internal scratch']
  %s0 = inlined_call_operand.hbm [shape: f32[1,2048], index: 0, kind: input, shape index: {}]
  %s1 = inlined_call_operand.hbm [shape: f32[1,2048], index: 1, kind: input, shape index: {}]
  %s2 = inlined_call_operand.hbm [shape: f32[1,2048], index: 2, kind: output, shape index: {}]
  %s3 = sld [smem:[#allocation0]]
  $region26: #{tpu_custom_call.1} parent=0
    _
  %s5 = ssub.s32 1, %s3
  %s6 = scalar_select 0, %s5, %s3
  $region1: #{tpu_custom_call.1} parent=0
    #allocation2 [shape = 'u8[8192]{0}', space=vmem, size = 0x2000, scoped, tag = 'input window, operand 0, single buffered']
    #allocation3 [shape = 's32[1]{0}', space=sflag, size = 0x4, scoped, tag = 'scoped memory for tpu_custom_call.1']
    #allocation4 [shape = 's32[1]{0}', space=sflag, size = 0x4, scoped, tag = 'scoped memory for tpu_custom_call.1']
    #allocation5 [shape = 'u8[8192]{0}', space=vmem, size = 0x2000, scoped, tag = 'input window, operand 1, single buffered']
    #allocation6 [shape = 's32[1]{0}', space=sflag, size = 0x4, scoped, tag = 'scoped memory for tpu_custom_call.1']
    #allocation7 [shape = 'u8[8192]{0}', space=vmem, size = 0x2000, scoped, tag = 'output window, operand 0, single buffered']
    %7 = vsyncpa [#allocation3], 0
    %8 = vsyncpa [#allocation6], 0
    %9 = vsyncpa [#allocation4], 0
    // Predicated region
    $region2: #{tpu_custom_call.1} parent=1 // pred_check
      _
    $region3: #{tpu_custom_call.1} parent=1 // pred_check_branch
      %11 = sbr.rel (0) target = $region5
    $region4: #{tpu_custom_call.1} parent=1 // pred_region
      %13 = vsyncadd [#allocation3], 0
      %s15 = sshll.u32 %s0, 4
      %s16 = int_to_ptr.hbm [resolvable:$true] %s15
      %s17 = sshll.u32 [#allocation2], 4
      %s18 = int_to_ptr.vmem [resolvable:$true] %s17
      %20 = dma.hbm_to_vmem [thread:$0]  %s16, 256, %s18, [#allocation3]
    $region5: #{tpu_custom_call.1} parent=1 // pred_fallthru
      _
    // Predicated region
    $region6: #{tpu_custom_call.1} parent=1 // pred_check
      _
    $region7: #{tpu_custom_call.1} parent=1 // pred_check_branch
      %22 = sbr.rel (0) target = $region9
    $region8: #{tpu_custom_call.1} parent=1 // pred_region
      %24 = vsyncadd [#allocation6], 0
      %s26 = sshll.u32 %s1, 4
      %s27 = int_to_ptr.hbm [resolvable:$true] %s26
      %s28 = sshll.u32 [#allocation5], 4
      %s29 = int_to_ptr.vmem [resolvable:$true] %s28
      %31 = dma.hbm_to_vmem [thread:$0]  %s27, 256, %s29, [#allocation6]
    $region9: #{tpu_custom_call.1} parent=1 // pred_fallthru
      _
    // Predicated region
    $region10: #{tpu_custom_call.1} parent=1 // pred_check
      _
    $region11: #{tpu_custom_call.1} parent=1 // pred_check_branch
      %33 = sbr.rel (0) target = $region13
    $region12: #{tpu_custom_call.1} parent=1 // pred_region
      %35 = dma.done [#allocation3], 256
    $region13: #{tpu_custom_call.1} parent=1 // pred_fallthru
      _
    // Predicated region
    $region14: #{tpu_custom_call.1} parent=1 // pred_check
      _
    $region15: #{tpu_custom_call.1} parent=1 // pred_check_branch
      %37 = sbr.rel (0) target = $region17
    $region16: #{tpu_custom_call.1} parent=1 // pred_region
      %39 = dma.done [#allocation6], 256
    $region17: #{tpu_custom_call.1} parent=1 // pred_fallthru
      _
    %v40 = vld [vmem:[#allocation2] sm:$0xff]
    %v41 = vld [vmem:[#allocation2 + $0x8] sm:$0xff]
    %v42 = vld [vmem:[#allocation5] sm:$0xff]
    %v43 = vld [vmem:[#allocation5 + $0x8] sm:$0xff]
    %v44 = vmul.f32 %v40, 0.1
    %v45 = vmul.f32 %v41, 0.1
    %v46 = vmul.f32 %v42, %v44
    %v47 = vmul.f32 %v43, %v45
    %v48 = vadd.f32 %v40, %v46
    %v49 = vadd.f32 %v41, %v47
    %50 = vst [vmem:[#allocation7] sm:$0xff] %v48
    %51 = vst [vmem:[#allocation7 + $0x8] sm:$0xff] %v49
    // Predicated region
    $region18: #{tpu_custom_call.1} parent=1 // pred_check
      _
    $region19: #{tpu_custom_call.1} parent=1 // pred_check_branch
      %53 = sbr.rel (0) target = $region21
    $region20: #{tpu_custom_call.1} parent=1 // pred_region
      %55 = vsyncadd [#allocation4], 0
      %s57 = sshll.u32 [#allocation7], 4
      %s58 = int_to_ptr.vmem [resolvable:$true] %s57
      %s59 = sshll.u32 %s2, 4
      %s60 = int_to_ptr.hbm [resolvable:$true] %s59
      %62 = dma.vmem_to_hbm [thread:$0]  %s58, 256, %s60, [#allocation4]
    $region21: #{tpu_custom_call.1} parent=1 // pred_fallthru
      _
    // Predicated region
    $region22: #{tpu_custom_call.1} parent=1 // pred_check
      _
    $region23: #{tpu_custom_call.1} parent=1 // pred_check_branch
      %64 = sbr.rel (0) target = $region25
    $region24: #{tpu_custom_call.1} parent=1 // pred_region
      %66 = dma.done [#allocation4], 256
    $region25: #{tpu_custom_call.1} parent=1 // pred_fallthru
      _
    %67 = vsyncpa [#allocation3], 1
    %68 = vsyncpa [#allocation6], 1
    %69 = vsyncpa [#allocation4], 1

</llo_original>
